<compile_context>
chip_gen: v5e
topology: v5e:2x2
jax: 0.10.0
libtpu: 0.0.40
codegen_flags: <defaults>
</compile_context>

<pallas_src>
import functools

import jax
import jax.numpy as jnp
from jax.experimental import pallas as pl
from jax.experimental.pallas import tpu as pltpu

_EPS = 1e-5  # torch.nn.GroupNorm default eps


def _rescale2d_kernel(x_ref, ref_ref, o_ref, *, hw: int):
    # x_ref / ref_ref / o_ref: (TB, H*W) — TB independent (n, c) instances,
    # spatial dims flattened onto the lane axis.
    x = x_ref[...].astype(jnp.float32)
    r = ref_ref[...].astype(jnp.float32)

    inv_hw = 1.0 / hw

    # ---- x stats: fused one-pass (sum, sum-of-squares), biased variance ----
    x_s1 = jnp.sum(x, axis=-1, keepdims=True)
    x_s2 = jnp.sum(x * x, axis=-1, keepdims=True)
    x_mean = x_s1 * inv_hw
    x_var = jnp.maximum(x_s2 * inv_hw - x_mean * x_mean, 0.0)
    inv_std = jax.lax.rsqrt(x_var + _EPS)

    # ---- ref stats: torch .std is unbiased (correction=1) ----
    r_s1 = jnp.sum(r, axis=-1, keepdims=True)
    r_s2 = jnp.sum(r * r, axis=-1, keepdims=True)
    r_mean = r_s1 * inv_hw
    # sum((r - mean)^2) = sum(r^2) - (sum r)^2 / hw
    r_ssq = jnp.maximum(r_s2 - r_s1 * r_mean, 0.0)
    # Guard hw == 1 (unbiased std undefined there); torch would emit NaN.
    r_std = jnp.sqrt(r_ssq * (1.0 / max(hw - 1, 1)))

    # Fold into a single per-row affine: out = x * a + b
    a = inv_std * r_std            # (TB, 1)
    b = r_mean - x_mean * a        # (TB, 1)
    o_ref[...] = (x * a + b).astype(o_ref.dtype)


def _round_up(a: int, b: int) -> int:
    return -(-a // b) * b


def rescale2d(x: jax.Array, ref: jax.Array) -> jax.Array:
    """ReScale2D forward: project x onto ref's per-channel radiometric scale."""
    assert x.shape == ref.shape and x.ndim == 4, "expect NCHW inputs of equal shape"
    N, C, H, W = x.shape
    rows = N * C
    hw = H * W

    # Lane-dense layout: one row per (n, c) instance, spatial on the lane axis.
    x2 = x.reshape(rows, hw)
    r2 = ref.reshape(rows, hw)

    itemsize = jnp.dtype(x.dtype).itemsize

    # Rows per block: as many instances as fit under ~2 MiB per pipeline buffer
    # (keeps 3 operands x 2 buffers + f32 temporaries well inside every chip's
    # scoped VMEM while amortizing the ~600-cycle per-grid-step overhead),
    # rounded to the sublane granule (8).
    target_block_bytes = 2 * 1024 * 1024
    tb = max(8, (target_block_bytes // max(hw * itemsize, 1)) // 8 * 8)
    rows_min = _round_up(rows, 8)
    tb = min(tb, rows_min)
    rows_padded = _round_up(rows, tb)

    if rows_padded != rows:
        pad = rows_padded - rows
        # Zero rows are numerically safe (a = 0, b = 0 -> output 0) and are
        # sliced off below.
        x2 = jnp.pad(x2, ((0, pad), (0, 0)))
        r2 = jnp.pad(r2, ((0, pad), (0, 0)))

    grid = (rows_padded // tb,)
    spec = pl.BlockSpec((tb, hw), lambda i: (i, 0))

    out2 = pl.pallas_call(
        functools.partial(_rescale2d_kernel, hw=hw),
        out_shape=jax.ShapeDtypeStruct((rows_padded, hw), x.dtype),
        grid_spec=pltpu.PrefetchScalarGridSpec(
            num_scalar_prefetch=0,
            grid=grid,
            in_specs=[spec, spec],
            out_specs=spec,
        ),
        compiler_params=pltpu.CompilerParams(
            dimension_semantics=("parallel",),
            vmem_limit_bytes=32 * 1024 * 1024,
        ),
        cost_estimate=pl.CostEstimate(
            flops=8 * rows * hw,
            transcendentals=2 * rows,
            bytes_accessed=3 * rows * hw * itemsize,
        ),
    )(x2, r2)

    return out2[:rows].reshape(N, C, H, W)


def _reference(x, ref):
    # Pure-JAX reference (two-pass, mirrors the torch module).
    x = x.astype(jnp.float32)
    r = ref.astype(jnp.float32)
    hw = x.shape[-1] * x.shape[-2]
    xm = jnp.mean(x, axis=(-1, -2), keepdims=True)
    xv = jnp.mean((x - xm) ** 2, axis=(-1, -2), keepdims=True)
    xn = (x - xm) / jnp.sqrt(xv + _EPS)
    rm = jnp.mean(r, axis=(-1, -2), keepdims=True)
    rv = jnp.sum((r - rm) ** 2, axis=(-1, -2), keepdims=True) / (hw - 1)
    return xn * jnp.sqrt(rv) + rm


if __name__ == "__main__":
    key = jax.random.PRNGKey(0)
    kx, kr = jax.random.split(key)
    # NCHW, small shapes: batch=2, channels=4, spatial=16x16
    x = jax.random.normal(kx, (2, 4, 16, 16), dtype=jnp.float32) * 3.0 + 1.5
    ref = jax.random.normal(kr, (2, 4, 16, 16), dtype=jnp.float32) * 0.5 - 2.0

    out = rescale2d(x, ref)
    jax.block_until_ready(out)

    expected = _reference(x, ref)
    assert out.shape == x.shape and out.dtype == x.dtype
    assert jnp.allclose(out, expected, atol=1e-4, rtol=1e-4), "mismatch vs reference"

    print("KERNEL_OK")
</pallas_src>

<mosaic_0001>
module attributes {stable_mosaic.version = 11 : i64} {
  func.func @_rescale2d_kernel(%arg0: i32, %arg1: memref<8x256xf32, #tpu.memory_space<vmem>>, %arg2: memref<8x256xf32, #tpu.memory_space<vmem>>, %arg3: memref<8x256xf32, #tpu.memory_space<vmem>>) attributes {dimension_semantics = [#tpu.dimension_semantics<parallel>], iteration_bounds = array<i64: 1>, scalar_prefetch = 0 : i64, scratch_operands = 0 : i64, tpu.core_type = #tpu.core_type<tc>, window_params = [{transform_indices = @transform_0, window_bounds = array<i64: 8, 256>}, {transform_indices = @transform_1, window_bounds = array<i64: 8, 256>}, {transform_indices = @transform_2, window_bounds = array<i64: 8, 256>}]} {
    %c0 = arith.constant 0 : index
    %c0_0 = arith.constant 0 : index
    %0 = vector.load %arg1[%c0, %c0_0] : memref<8x256xf32, #tpu.memory_space<vmem>>, vector<8x256xf32>
    %c0_1 = arith.constant 0 : index
    %c0_2 = arith.constant 0 : index
    %1 = vector.load %arg2[%c0_1, %c0_2] : memref<8x256xf32, #tpu.memory_space<vmem>>, vector<8x256xf32>
    %cst = arith.constant dense<0.000000e+00> : vector<8xf32>
    %2 = vector.multi_reduction <add>, %0, %cst [1] : vector<8x256xf32> to vector<8xf32>
    %3 = vector.shape_cast %2 : vector<8xf32> to vector<8x1xf32>
    %4 = arith.mulf %0, %0 : vector<8x256xf32>
    %cst_3 = arith.constant dense<0.000000e+00> : vector<8xf32>
    %5 = vector.multi_reduction <add>, %4, %cst_3 [1] : vector<8x256xf32> to vector<8xf32>
    %6 = vector.shape_cast %5 : vector<8xf32> to vector<8x1xf32>
    %cst_4 = arith.constant 3.906250e-03 : f32
    %7 = vector.broadcast %cst_4 : f32 to vector<8x1xf32>
    %8 = arith.mulf %3, %7 : vector<8x1xf32>
    %cst_5 = arith.constant 3.906250e-03 : f32
    %9 = vector.broadcast %cst_5 : f32 to vector<8x1xf32>
    %10 = arith.mulf %6, %9 : vector<8x1xf32>
    %11 = arith.mulf %8, %8 : vector<8x1xf32>
    %12 = arith.subf %10, %11 : vector<8x1xf32>
    %cst_6 = arith.constant 0.000000e+00 : f32
    %13 = vector.broadcast %cst_6 : f32 to vector<8x1xf32>
    %14 = arith.maximumf %12, %13 : vector<8x1xf32>
    %cst_7 = arith.constant 9.99999974E-6 : f32
    %15 = vector.broadcast %cst_7 : f32 to vector<8x1xf32>
    %16 = arith.addf %14, %15 : vector<8x1xf32>
    %17 = math.rsqrt %16 : vector<8x1xf32>
    %cst_8 = arith.constant dense<0.000000e+00> : vector<8xf32>
    %18 = vector.multi_reduction <add>, %1, %cst_8 [1] : vector<8x256xf32> to vector<8xf32>
    %19 = vector.shape_cast %18 : vector<8xf32> to vector<8x1xf32>
    %20 = arith.mulf %1, %1 : vector<8x256xf32>
    %cst_9 = arith.constant dense<0.000000e+00> : vector<8xf32>
    %21 = vector.multi_reduction <add>, %20, %cst_9 [1] : vector<8x256xf32> to vector<8xf32>
    %22 = vector.shape_cast %21 : vector<8xf32> to vector<8x1xf32>
    %cst_10 = arith.constant 3.906250e-03 : f32
    %23 = vector.broadcast %cst_10 : f32 to vector<8x1xf32>
    %24 = arith.mulf %19, %23 : vector<8x1xf32>
    %25 = arith.mulf %19, %24 : vector<8x1xf32>
    %26 = arith.subf %22, %25 : vector<8x1xf32>
    %cst_11 = arith.constant 0.000000e+00 : f32
    %27 = vector.broadcast %cst_11 : f32 to vector<8x1xf32>
    %28 = arith.maximumf %26, %27 : vector<8x1xf32>
    %cst_12 = arith.constant 0.00392156886 : f32
    %29 = vector.broadcast %cst_12 : f32 to vector<8x1xf32>
    %30 = arith.mulf %28, %29 : vector<8x1xf32>
    %31 = math.sqrt %30 : vector<8x1xf32>
    %32 = arith.mulf %17, %31 : vector<8x1xf32>
    %33 = arith.mulf %8, %32 : vector<8x1xf32>
    %34 = arith.subf %24, %33 : vector<8x1xf32>
    %35 = vector.broadcast %32 : vector<8x1xf32> to vector<8x256xf32>
    %36 = arith.mulf %0, %35 : vector<8x256xf32>
    %37 = vector.broadcast %34 : vector<8x1xf32> to vector<8x256xf32>
    %38 = arith.addf %36, %37 : vector<8x256xf32>
    %c0_13 = arith.constant 0 : index
    %c0_14 = arith.constant 0 : index
    %39 = vector.load %arg3[%c0_13, %c0_14] : memref<8x256xf32, #tpu.memory_space<vmem>>, vector<8x256xf32>
    tpu.vector_store %arg3[%c0_13, %c0_14], %38 {strides = array<i32>} : memref<8x256xf32, #tpu.memory_space<vmem>>, vector<8x256xf32>,
    return
  }
  func.func @transform_0(%arg0: i32) -> (i32, i32) {
    %c0_i32 = arith.constant 0 : i32
    %c0_i32_0 = arith.constant 0 : i32
    return %arg0, %c0_i32 : i32, i32
  }
  func.func @transform_1(%arg0: i32) -> (i32, i32) {
    %c0_i32 = arith.constant 0 : i32
    %c0_i32_0 = arith.constant 0 : i32
    return %arg0, %c0_i32 : i32, i32
  }
  func.func @transform_2(%arg0: i32) -> (i32, i32) {
    %c0_i32 = arith.constant 0 : i32
    %c0_i32_0 = arith.constant 0 : i32
    return %arg0, %c0_i32 : i32, i32
  }
}

</mosaic_0001>

<llo_original>
// kernel: tpu_custom_call.1
$region0: #{tpu_custom_call.1}
  #allocation0 [shape = 'u32[]', space=smem, size = 0x4, offset = 0x4, fixed_abs, tag = 'smem constant byte address 0x4 - core index']
  #allocation1 [shape = 'u32[72,128]{1,0:T(1,128)}', space=vmem, size = 0x9000, scoped, tag = 'internal scratch']
  %s0 = inlined_call_operand.hbm [shape: f32[8,256], index: 0, kind: input, shape index: {}]
  %s1 = inlined_call_operand.hbm [shape: f32[8,256], index: 1, kind: input, shape index: {}]
  %s2 = inlined_call_operand.hbm [shape: f32[8,256], index: 2, kind: output, shape index: {}]
  %s3 = sld [smem:[#allocation0]]
  $region26: #{tpu_custom_call.1} parent=0
    _
  %s5 = ssub.s32 1, %s3
  %s6 = scalar_select 0, %s5, %s3
  $region1: #{tpu_custom_call.1} parent=0
    #allocation2 [shape = 'u8[8192]{0}', space=vmem, size = 0x2000, scoped, tag = 'input window, operand 0, single buffered']
    #allocation3 [shape = 's32[1]{0}', space=sflag, size = 0x4, scoped, tag = 'scoped memory for tpu_custom_call.1']
    #allocation4 [shape = 's32[1]{0}', space=sflag, size = 0x4, scoped, tag = 'scoped memory for tpu_custom_call.1']
    #allocation5 [shape = 'u8[8192]{0}', space=vmem, size = 0x2000, scoped, tag = 'input window, operand 1, single buffered']
    #allocation6 [shape = 's32[1]{0}', space=sflag, size = 0x4, scoped, tag = 'scoped memory for tpu_custom_call.1']
    #allocation7 [shape = 'u8[8192]{0}', space=vmem, size = 0x2000, scoped, tag = 'output window, operand 0, single buffered']
    %7 = vsyncpa [#allocation3], 0
    %8 = vsyncpa [#allocation6], 0
    %9 = vsyncpa [#allocation4], 0
    // Predicated region
    $region2: #{tpu_custom_call.1} parent=1 // pred_check
      _
    $region3: #{tpu_custom_call.1} parent=1 // pred_check_branch
      %11 = sbr.rel (0) target = $region5
    $region4: #{tpu_custom_call.1} parent=1 // pred_region
      %13 = vsyncadd [#allocation3], 0
      %s15 = sshll.u32 %s0, 4
      %s16 = int_to_ptr.hbm [resolvable:$true] %s15
      %s17 = sshll.u32 [#allocation2], 4
      %s18 = int_to_ptr.vmem [resolvable:$true] %s17
      %20 = dma.hbm_to_vmem [thread:$0]  %s16, 256, %s18, [#allocation3]
    $region5: #{tpu_custom_call.1} parent=1 // pred_fallthru
      _
    // Predicated region
    $region6: #{tpu_custom_call.1} parent=1 // pred_check
      _
    $region7: #{tpu_custom_call.1} parent=1 // pred_check_branch
      %22 = sbr.rel (0) target = $region9
    $region8: #{tpu_custom_call.1} parent=1 // pred_region
      %24 = vsyncadd [#allocation6], 0
      %s26 = sshll.u32 %s1, 4
      %s27 = int_to_ptr.hbm [resolvable:$true] %s26
      %s28 = sshll.u32 [#allocation5], 4
      %s29 = int_to_ptr.vmem [resolvable:$true] %s28
      %31 = dma.hbm_to_vmem [thread:$0]  %s27, 256, %s29, [#allocation6]
    $region9: #{tpu_custom_call.1} parent=1 // pred_fallthru
      _
    // Predicated region
    $region10: #{tpu_custom_call.1} parent=1 // pred_check
      _
    $region11: #{tpu_custom_call.1} parent=1 // pred_check_branch
      %33 = sbr.rel (0) target = $region13
    $region12: #{tpu_custom_call.1} parent=1 // pred_region
      %35 = dma.done [#allocation3], 256
    $region13: #{tpu_custom_call.1} parent=1 // pred_fallthru
      _
    // Predicated region
    $region14: #{tpu_custom_call.1} parent=1 // pred_check
      _
    $region15: #{tpu_custom_call.1} parent=1 // pred_check_branch
      %37 = sbr.rel (0) target = $region17
    $region16: #{tpu_custom_call.1} parent=1 // pred_region
      %39 = dma.done [#allocation6], 256
    $region17: #{tpu_custom_call.1} parent=1 // pred_fallthru
      _
    %v40 = vld [vmem:[#allocation2] sm:$0xff]
    %v41 = vld [vmem:[#allocation2 + $0x8] sm:$0xff]
    %v42 = vld [vmem:[#allocation5] sm:$0xff]
    %v43 = vld [vmem:[#allocation5 + $0x8] sm:$0xff]
    %v44 = vadd.f32 %v40, %v41
    %45 = vadd.xlane.f32.xlu0 %v44
    %v46 = vpop.xlane.xlu0 %45
    %v47 = vmul.f32 %v40, %v40
    %v48 = vmul.f32 %v41, %v41
    %v49 = vadd.f32 %v47, %v48
    %50 = vadd.xlane.f32.xlu0 %v49
    %v51 = vpop.xlane.xlu0 %50
    %v52 = vmul.f32 %v46, 0.00390625
    %v53 = vmul.f32 %v51, 0.00390625
    %v54 = vmul.f32 %v52, %v52
    %v55 = vsub.f32 %v53, %v54
    %v56 = vmax.f32 %v55, 0.0
    %v57 = vadd.f32 %v56, 1e-05
    %v58 = vrsqrt.pop %v57
    %v59 = vmul.f32 %v58, %v57
    %v60 = vmul.f32 %v59, %v58
    %v61 = vmul.f32 0.5, %v60
    %v62 = vsub.f32 1.5, %v61
    %v63 = vmul.f32 %v58, %v62
    %vm64 = vweird.f32 %v57
    %vm65 = vweird.f32 %v58
    %vm66 = vmor %vm64, %vm65
    %v67 = vsel %vm66, %v58, %v63
    %v68 = vadd.f32 %v42, %v43
    %69 = vadd.xlane.f32.xlu0 %v68
    %v70 = vpop.xlane.xlu0 %69
    %v71 = vmul.f32 %v42, %v42
    %v72 = vmul.f32 %v43, %v43
    %v73 = vadd.f32 %v71, %v72
    %74 = vadd.xlane.f32.xlu0 %v73
    %v75 = vpop.xlane.xlu0 %74
    %v76 = vmul.f32 %v70, 0.00390625
    %v77 = vmul.f32 %v70, %v76
    %v78 = vsub.f32 %v75, %v77
    %v79 = vmax.f32 %v78, 0.0
    %v80 = vmul.f32 %v79, 0.003921569
    %v81 = vrsqrt.pop %v80
    %v82 = vmul.f32 %v81, %v80
    %v83 = vmul.f32 %v82, %v81
    %v84 = vmul.f32 0.5, %v83
    %v85 = vsub.f32 1.5, %v84
    %v86 = vmul.f32 %v81, %v85
    %v87 = vmul.f32 %v80, %v86
    %vm88 = vcmp.eq.f32.partialorder %v80, inf
    %v89 = vsel %vm88, %v80, %v87
    %vm90 = vcmp.eq.f32.partialorder %v80, 0.0
    %v91 = vand.u32 %v80, 2147483648
    %v92 = vsel %vm90, %v91, %v89
    %v93 = vmul.f32 %v67, %v92
    %v94 = vmul.f32 %v52, %v93
    %v95 = vsub.f32 %v76, %v94
    %v96 = vmul.f32 %v40, %v93
    %v97 = vmul.f32 %v41, %v93
    %v98 = vadd.f32 %v96, %v95
    %v99 = vadd.f32 %v97, %v95
    %100 = vst [vmem:[#allocation7] sm:$0xff] %v98
    %101 = vst [vmem:[#allocation7 + $0x8] sm:$0xff] %v99
    // Predicated region
    $region18: #{tpu_custom_call.1} parent=1 // pred_check
      _
    $region19: #{tpu_custom_call.1} parent=1 // pred_check_branch
      %103 = sbr.rel (0) target = $region21
    $region20: #{tpu_custom_call.1} parent=1 // pred_region
      %105 = vsyncadd [#allocation4], 0
      %s107 = sshll.u32 [#allocation7], 4
      %s108 = int_to_ptr.vmem [resolvable:$true] %s107
      %s109 = sshll.u32 %s2, 4
      %s110 = int_to_ptr.hbm [resolvable:$true] %s109
      %112 = dma.vmem_to_hbm [thread:$0]  %s108, 256, %s110, [#allocation4]
    $region21: #{tpu_custom_call.1} parent=1 // pred_fallthru
      _
    // Predicated region
    $region22: #{tpu_custom_call.1} parent=1 // pred_check
      _
    $region23: #{tpu_custom_call.1} parent=1 // pred_check_branch
      %114 = sbr.rel (0) target = $region25
    $region24: #{tpu_custom_call.1} parent=1 // pred_region
      %116 = dma.done [#allocation4], 256
    $region25: #{tpu_custom_call.1} parent=1 // pred_fallthru
      _
    %117 = vsyncpa [#allocation3], 1
    %118 = vsyncpa [#allocation6], 1
    %119 = vsyncpa [#allocation4], 1

</llo_original>
